<compile_context>
chip_gen: v5e
topology: v5e:2x2
jax: 0.10.0
libtpu: 0.0.40
codegen_flags: <defaults>
</compile_context>

<pallas_src>
import functools

import jax
import jax.numpy as jnp
from jax.experimental import pallas as pl
from jax.experimental.pallas import tpu as pltpu


def _round_up(x, m):
    return ((x + m - 1) // m) * m


def _choose_tile(b_pad, tile_m):
    """Largest multiple-of-128 divisor of b_pad that is <= tile_m, with the extra
    constraint that the grid has >= 2 steps whenever b_pad allows it (megacore)."""
    cap = min(tile_m, b_pad)
    if b_pad >= 256:
        cap = min(cap, b_pad // 2)   # guarantee >= 2 grid steps for 2-TC sharding
    best = 128
    t = 128
    while t <= cap:
        if b_pad % t == 0:
            best = t
        t += 128
    return best


def _mlp_kernel(parent_ref, child_ref, poly_ref,
                wp_ref, bp_ref,
                w1p_ref, w1q_ref, w1c_ref, b1_ref,
                w2_ref, b2_ref,
                w3t_ref, b3t_ref,
                out_ref):
    f32, bf16 = jnp.float32, jnp.bfloat16

    parent = parent_ref[...].astype(bf16)          # (TM, E)
    child = child_ref[...].astype(bf16)            # (TM, E)
    poly_in = poly_ref[...].astype(bf16)           # (TM, P)

    # poly_net: Linear(P -> 32) + ReLU             (Dropout(0.2) identity in eval)
    poly = jnp.dot(poly_in, wp_ref[...], preferred_element_type=f32) + bp_ref[...]
    poly = jnp.maximum(poly, 0.0).astype(bf16)

    # main layer 1: Linear(2E + 32 -> 256) + ReLU  (Dropout(0.4) identity in eval)
    # concat([parent, poly, child]) @ W1 == parent@W1_par + poly@W1_poly + child@W1_chd
    h1 = (jnp.dot(parent, w1p_ref[...], preferred_element_type=f32)
          + jnp.dot(poly, w1q_ref[...], preferred_element_type=f32)
          + jnp.dot(child, w1c_ref[...], preferred_element_type=f32)
          + b1_ref[...])
    h1 = jnp.maximum(h1, 0.0).astype(bf16)

    # main layer 2: Linear(256 -> 128) + ReLU      (Dropout(0.3) identity in eval)
    h2 = jnp.dot(h1, w2_ref[...], preferred_element_type=f32) + b2_ref[...]
    h2 = jnp.maximum(h2, 0.0)                      # keep f32 for the transpose

    # output layer, transposed: one XLU transpose of h2, then an (8,128)x(128,TM) MXU
    # dot -> lane-dense (8, TM) f32 store instead of a 128-wide padded slab.
    h2t = h2.T.astype(bf16)                        # (H2, TM)
    logits_t = jnp.dot(w3t_ref[...], h2t, preferred_element_type=f32) + b3t_ref[...]
    out_ref[...] = (jax.nn.sigmoid(logits_t) * 255.0).astype(out_ref.dtype)


@functools.partial(jax.jit, static_argnames=("tile_m",))
def rgb_prediction_forward(parent_embed, child_polygon, child_embed, params, *, tile_m=1024):
    """Runs the whole MLP as one batch-tiled Pallas kernel with VMEM-resident weights."""
    bf16 = jnp.bfloat16
    B, E = parent_embed.shape
    P = child_polygon.shape[1]
    out_dim = params["b3"].shape[-1]
    out_rows = max(8, _round_up(out_dim, 8))       # sublane-padded output rows (3 -> 8)

    # --- batch padding & tiling --------------------------------------------------
    B_pad = _round_up(B, 128)                      # small quantum, not a full tile
    TM = _choose_tile(B_pad, tile_m)

    def pad_rows(x):
        return jnp.pad(x, ((0, B_pad - B), (0, 0))) if B_pad != B else x

    parent = pad_rows(parent_embed)                # f32; cast to bf16 inside the kernel
    child = pad_rows(child_embed)
    poly = pad_rows(child_polygon)

    # --- weights: bf16 matmul operands, f32 biases (tiny, VMEM-resident) ----------
    wp = params["wp"].astype(bf16)
    bp = params["bp"]
    w1p = params["w1_parent"].astype(bf16)
    w1q = params["w1_poly"].astype(bf16)
    w1c = params["w1_child"].astype(bf16)
    b1 = params["b1"]
    w2 = params["w2"].astype(bf16)
    b2 = params["b2"]
    # Output layer stored transposed, rows padded out_dim -> out_rows, for a
    # lane-dense (out_rows, TM) store along the batch dimension.
    h2_dim = params["w3"].shape[0]
    w3t = jnp.zeros((out_rows, h2_dim), bf16).at[:out_dim, :].set(
        params["w3"].T.astype(bf16))
    b3t = jnp.zeros((out_rows, 1), jnp.float32).at[:out_dim, 0].set(params["b3"][0])

    operands = (parent, child, poly, wp, bp, w1p, w1q, w1c, b1, w2, b2, w3t, b3t)

    # --- specs ---------------------------------------------------------------------
    def batch_spec(arr):
        return pl.BlockSpec((TM, arr.shape[1]), lambda i: (i, 0))

    def resident_spec(arr):
        # Constant index_map -> Pallas keeps the block VMEM-resident (no re-DMA/step).
        return pl.BlockSpec(arr.shape, lambda i: (0, 0))

    in_specs = [
        batch_spec(parent), batch_spec(child), batch_spec(poly),
        resident_spec(wp), resident_spec(bp),
        resident_spec(w1p), resident_spec(w1q), resident_spec(w1c), resident_spec(b1),
        resident_spec(w2), resident_spec(b2),
        resident_spec(w3t), resident_spec(b3t),
    ]
    out_spec = pl.BlockSpec((out_rows, TM), lambda i: (0, i))

    out_t = pl.pallas_call(
        _mlp_kernel,
        out_shape=jax.ShapeDtypeStruct((out_rows, B_pad), jnp.float32),
        grid=(B_pad // TM,),
        in_specs=in_specs,
        out_specs=out_spec,
        compiler_params=pltpu.CompilerParams(
            dimension_semantics=("parallel",),
            vmem_limit_bytes=(64 * 1024 * 1024 if TM >= 2048 else None),
        ),
    )(*operands)

    # (out_rows, B_pad) -> (B, out_dim): tiny slice + transpose on the XLA side.
    return out_t[:out_dim, :B].T


def init_params(key, text_embed_dim, poly_feature_dim=10,
                hidden_dims=(256, 128), output_dim=3):
    """Deterministic synthetic parameters matching RGBPredictionModel's shapes.
    Weights stored as [in_dim, out_dim] (transposed w.r.t. torch.nn.Linear.weight)."""
    poly_proc_dim = 32
    total_input_dim = text_embed_dim * 2 + poly_proc_dim
    h1, h2 = hidden_dims

    keys = jax.random.split(key, 4)

    def lin(k, fan_in, fan_out):
        bound = 1.0 / jnp.sqrt(jnp.float32(fan_in))
        kw, kb = jax.random.split(k)
        w = jax.random.uniform(kw, (fan_in, fan_out), jnp.float32, -bound, bound)
        b = jax.random.uniform(kb, (1, fan_out), jnp.float32, -bound, bound)
        return w, b

    wp, bp = lin(keys[0], poly_feature_dim, poly_proc_dim)
    w1, b1 = lin(keys[1], total_input_dim, h1)
    w2, b2 = lin(keys[2], h1, h2)
    w3, b3 = lin(keys[3], h2, output_dim)

    # Split W1 rows to match concat order: [parent_embed, poly_processed, child_embed]
    w1_parent = w1[:text_embed_dim]
    w1_poly = w1[text_embed_dim:text_embed_dim + poly_proc_dim]
    w1_child = w1[text_embed_dim + poly_proc_dim:]

    return {
        "wp": wp, "bp": bp,
        "w1_parent": w1_parent, "w1_poly": w1_poly, "w1_child": w1_child, "b1": b1,
        "w2": w2, "b2": b2,
        "w3": w3, "b3": b3,
    }


def reference_forward(parent_embed, child_polygon, child_embed, params):
    """Pure-JAX reference with the SAME bf16-operand / f32-accumulate quantization
    as the kernel, using the original concat formulation."""
    bf16, f32 = jnp.bfloat16, jnp.float32
    q = lambda x: x.astype(bf16)

    poly = jnp.dot(q(child_polygon), q(params["wp"]), preferred_element_type=f32) + params["bp"]
    poly = jnp.maximum(poly, 0.0).astype(bf16)

    comb = jnp.concatenate([q(parent_embed), poly, q(child_embed)], axis=1)
    w1 = jnp.concatenate(
        [q(params["w1_parent"]), q(params["w1_poly"]), q(params["w1_child"])], axis=0)
    h1 = jnp.maximum(jnp.dot(comb, w1, preferred_element_type=f32) + params["b1"], 0.0)
    h1 = h1.astype(bf16)

    h2 = jnp.maximum(jnp.dot(h1, q(params["w2"]), preferred_element_type=f32) + params["b2"], 0.0)
    h2 = h2.astype(bf16)

    logits = jnp.dot(h2, q(params["w3"]), preferred_element_type=f32) + params["b3"]
    return jax.nn.sigmoid(logits) * 255.0


def _check(B, text_embed_dim, poly_dim, key):
    k_par, k_poly, k_child, k_params = jax.random.split(key, 4)
    parent_embed = jax.random.normal(k_par, (B, text_embed_dim), jnp.float32)
    child_polygon = jax.random.normal(k_poly, (B, poly_dim), jnp.float32)
    child_embed = jax.random.normal(k_child, (B, text_embed_dim), jnp.float32)
    params = init_params(k_params, text_embed_dim, poly_dim)

    out = rgb_prediction_forward(parent_embed, child_polygon, child_embed, params)
    out = jax.block_until_ready(out)
    ref = reference_forward(parent_embed, child_polygon, child_embed, params)

    assert out.shape == (B, 3), out.shape
    assert jnp.allclose(out, ref, atol=1e-1, rtol=1e-2), (
        "mismatch vs pure-JAX reference: max abs diff "
        f"{float(jnp.max(jnp.abs(out - ref)))}")


if __name__ == "__main__":
    key = jax.random.PRNGKey(0)
    k_small, k_multi = jax.random.split(key)

    TEXT_EMBED_DIM = 64   # text embedding dim
    POLY_DIM = 10         # polygon feature dim (module default)

    _check(8, TEXT_EMBED_DIM, POLY_DIM, k_small)     # single-step grid
    _check(300, TEXT_EMBED_DIM, POLY_DIM, k_multi)   # multi-step grid (3 tiles of 128)

    print("KERNEL_OK")
</pallas_src>

<mosaic_0001>
module attributes {stable_mosaic.version = 11 : i64} {
  func.func @_mlp_kernel(%arg0: i32, %arg1: memref<128x64xf32, #tpu.memory_space<vmem>>, %arg2: memref<128x64xf32, #tpu.memory_space<vmem>>, %arg3: memref<128x10xf32, #tpu.memory_space<vmem>>, %arg4: memref<10x32xbf16, #tpu.memory_space<vmem>>, %arg5: memref<1x32xf32, #tpu.memory_space<vmem>>, %arg6: memref<64x256xbf16, #tpu.memory_space<vmem>>, %arg7: memref<32x256xbf16, #tpu.memory_space<vmem>>, %arg8: memref<64x256xbf16, #tpu.memory_space<vmem>>, %arg9: memref<1x256xf32, #tpu.memory_space<vmem>>, %arg10: memref<256x128xbf16, #tpu.memory_space<vmem>>, %arg11: memref<1x128xf32, #tpu.memory_space<vmem>>, %arg12: memref<8x128xbf16, #tpu.memory_space<vmem>>, %arg13: memref<8x1xf32, #tpu.memory_space<vmem>>, %arg14: memref<8x128xf32, #tpu.memory_space<vmem>>) attributes {dimension_semantics = [#tpu.dimension_semantics<parallel>], iteration_bounds = array<i64: 1>, scalar_prefetch = 0 : i64, scratch_operands = 0 : i64, tpu.core_type = #tpu.core_type<tc>, window_params = [{transform_indices = @transform_0, window_bounds = array<i64: 128, 64>}, {transform_indices = @transform_1, window_bounds = array<i64: 128, 64>}, {transform_indices = @transform_2, window_bounds = array<i64: 128, 10>}, {pipeline_mode = #tpu.pipeline_mode<synchronous>, transform_indices = @transform_3, window_bounds = array<i64: 10, 32>}, {pipeline_mode = #tpu.pipeline_mode<synchronous>, transform_indices = @transform_4, window_bounds = array<i64: 1, 32>}, {pipeline_mode = #tpu.pipeline_mode<synchronous>, transform_indices = @transform_5, window_bounds = array<i64: 64, 256>}, {pipeline_mode = #tpu.pipeline_mode<synchronous>, transform_indices = @transform_6, window_bounds = array<i64: 32, 256>}, {pipeline_mode = #tpu.pipeline_mode<synchronous>, transform_indices = @transform_7, window_bounds = array<i64: 64, 256>}, {pipeline_mode = #tpu.pipeline_mode<synchronous>, transform_indices = @transform_8, window_bounds = array<i64: 1, 256>}, {pipeline_mode = #tpu.pipeline_mode<synchronous>, transform_indices = @transform_9, window_bounds = array<i64: 256, 128>}, {pipeline_mode = #tpu.pipeline_mode<synchronous>, transform_indices = @transform_10, window_bounds = array<i64: 1, 128>}, {pipeline_mode = #tpu.pipeline_mode<synchronous>, transform_indices = @transform_11, window_bounds = array<i64: 8, 128>}, {pipeline_mode = #tpu.pipeline_mode<synchronous>, transform_indices = @transform_12, window_bounds = array<i64: 8, 1>}, {transform_indices = @transform_13, window_bounds = array<i64: 8, 128>}]} {
    %c0 = arith.constant 0 : index
    %c0_0 = arith.constant 0 : index
    %0 = vector.load %arg1[%c0, %c0_0] : memref<128x64xf32, #tpu.memory_space<vmem>>, vector<128x64xf32>
    %1 = arith.truncf %0 : vector<128x64xf32> to vector<128x64xbf16>
    %c0_1 = arith.constant 0 : index
    %c0_2 = arith.constant 0 : index
    %2 = vector.load %arg2[%c0_1, %c0_2] : memref<128x64xf32, #tpu.memory_space<vmem>>, vector<128x64xf32>
    %3 = arith.truncf %2 : vector<128x64xf32> to vector<128x64xbf16>
    %c0_3 = arith.constant 0 : index
    %c0_4 = arith.constant 0 : index
    %4 = vector.load %arg3[%c0_3, %c0_4] : memref<128x10xf32, #tpu.memory_space<vmem>>, vector<128x10xf32>
    %5 = arith.truncf %4 : vector<128x10xf32> to vector<128x10xbf16>
    %c0_5 = arith.constant 0 : index
    %c0_6 = arith.constant 0 : index
    %6 = vector.load %arg4[%c0_5, %c0_6] : memref<10x32xbf16, #tpu.memory_space<vmem>>, vector<10x32xbf16>
    %cst = arith.constant dense<0.000000e+00> : vector<128x32xf32>
    %7 = tpu.matmul %5, %6, %cst {dimension_numbers = #tpu.dot_dimension_numbers<[1], [0], [0], [1], [0, 0, 1, 1], [], []>} : vector<128x10xbf16>, vector<10x32xbf16>, vector<128x32xf32> -> vector<128x32xf32>
    %c0_7 = arith.constant 0 : index
    %c0_8 = arith.constant 0 : index
    %8 = vector.load %arg5[%c0_7, %c0_8] : memref<1x32xf32, #tpu.memory_space<vmem>>, vector<1x32xf32>
    %9 = vector.broadcast %8 : vector<1x32xf32> to vector<128x32xf32>
    %10 = arith.addf %7, %9 : vector<128x32xf32>
    %cst_9 = arith.constant 0.000000e+00 : f32
    %11 = vector.broadcast %cst_9 : f32 to vector<128x32xf32>
    %12 = arith.maximumf %10, %11 : vector<128x32xf32>
    %13 = arith.truncf %12 : vector<128x32xf32> to vector<128x32xbf16>
    %c0_10 = arith.constant 0 : index
    %c0_11 = arith.constant 0 : index
    %14 = vector.load %arg6[%c0_10, %c0_11] : memref<64x256xbf16, #tpu.memory_space<vmem>>, vector<64x256xbf16>
    %cst_12 = arith.constant dense<0.000000e+00> : vector<128x256xf32>
    %15 = tpu.matmul %1, %14, %cst_12 {dimension_numbers = #tpu.dot_dimension_numbers<[1], [0], [0], [1], [0, 0, 1, 1], [], []>} : vector<128x64xbf16>, vector<64x256xbf16>, vector<128x256xf32> -> vector<128x256xf32>
    %c0_13 = arith.constant 0 : index
    %c0_14 = arith.constant 0 : index
    %16 = vector.load %arg7[%c0_13, %c0_14] : memref<32x256xbf16, #tpu.memory_space<vmem>>, vector<32x256xbf16>
    %cst_15 = arith.constant dense<0.000000e+00> : vector<128x256xf32>
    %17 = tpu.matmul %13, %16, %cst_15 {dimension_numbers = #tpu.dot_dimension_numbers<[1], [0], [0], [1], [0, 0, 1, 1], [], []>} : vector<128x32xbf16>, vector<32x256xbf16>, vector<128x256xf32> -> vector<128x256xf32>
    %18 = arith.addf %15, %17 : vector<128x256xf32>
    %c0_16 = arith.constant 0 : index
    %c0_17 = arith.constant 0 : index
    %19 = vector.load %arg8[%c0_16, %c0_17] : memref<64x256xbf16, #tpu.memory_space<vmem>>, vector<64x256xbf16>
    %cst_18 = arith.constant dense<0.000000e+00> : vector<128x256xf32>
    %20 = tpu.matmul %3, %19, %cst_18 {dimension_numbers = #tpu.dot_dimension_numbers<[1], [0], [0], [1], [0, 0, 1, 1], [], []>} : vector<128x64xbf16>, vector<64x256xbf16>, vector<128x256xf32> -> vector<128x256xf32>
    %21 = arith.addf %18, %20 : vector<128x256xf32>
    %c0_19 = arith.constant 0 : index
    %c0_20 = arith.constant 0 : index
    %22 = vector.load %arg9[%c0_19, %c0_20] : memref<1x256xf32, #tpu.memory_space<vmem>>, vector<1x256xf32>
    %23 = vector.broadcast %22 : vector<1x256xf32> to vector<128x256xf32>
    %24 = arith.addf %21, %23 : vector<128x256xf32>
    %cst_21 = arith.constant 0.000000e+00 : f32
    %25 = vector.broadcast %cst_21 : f32 to vector<128x256xf32>
    %26 = arith.maximumf %24, %25 : vector<128x256xf32>
    %27 = arith.truncf %26 : vector<128x256xf32> to vector<128x256xbf16>
    %c0_22 = arith.constant 0 : index
    %c0_23 = arith.constant 0 : index
    %28 = vector.load %arg10[%c0_22, %c0_23] : memref<256x128xbf16, #tpu.memory_space<vmem>>, vector<256x128xbf16>
    %cst_24 = arith.constant dense<0.000000e+00> : vector<128x128xf32>
    %29 = tpu.matmul %27, %28, %cst_24 {dimension_numbers = #tpu.dot_dimension_numbers<[1], [0], [0], [1], [0, 0, 1, 1], [], []>} : vector<128x256xbf16>, vector<256x128xbf16>, vector<128x128xf32> -> vector<128x128xf32>
    %c0_25 = arith.constant 0 : index
    %c0_26 = arith.constant 0 : index
    %30 = vector.load %arg11[%c0_25, %c0_26] : memref<1x128xf32, #tpu.memory_space<vmem>>, vector<1x128xf32>
    %31 = vector.broadcast %30 : vector<1x128xf32> to vector<128x128xf32>
    %32 = arith.addf %29, %31 : vector<128x128xf32>
    %cst_27 = arith.constant 0.000000e+00 : f32
    %33 = vector.broadcast %cst_27 : f32 to vector<128x128xf32>
    %34 = arith.maximumf %32, %33 : vector<128x128xf32>
    %35 = tpu.transpose %34, [1, 0] : vector<128x128xf32> -> vector<128x128xf32>
    %36 = arith.truncf %35 : vector<128x128xf32> to vector<128x128xbf16>
    %c0_28 = arith.constant 0 : index
    %c0_29 = arith.constant 0 : index
    %37 = vector.load %arg12[%c0_28, %c0_29] : memref<8x128xbf16, #tpu.memory_space<vmem>>, vector<8x128xbf16>
    %cst_30 = arith.constant dense<0.000000e+00> : vector<8x128xf32>
    %38 = tpu.matmul %37, %36, %cst_30 {dimension_numbers = #tpu.dot_dimension_numbers<[1], [0], [0], [1], [0, 0, 1, 1], [], []>} : vector<8x128xbf16>, vector<128x128xbf16>, vector<8x128xf32> -> vector<8x128xf32>
    %c0_31 = arith.constant 0 : index
    %c0_32 = arith.constant 0 : index
    %39 = vector.load %arg13[%c0_31, %c0_32] : memref<8x1xf32, #tpu.memory_space<vmem>>, vector<8x1xf32>
    %40 = vector.broadcast %39 : vector<8x1xf32> to vector<8x128xf32>
    %41 = arith.addf %38, %40 : vector<8x128xf32>
    %42 = arith.negf %41 : vector<8x128xf32>
    %43 = math.exp %42 : vector<8x128xf32>
    %cst_33 = arith.constant 1.000000e+00 : f32
    %44 = vector.broadcast %cst_33 : f32 to vector<8x128xf32>
    %45 = arith.addf %44, %43 : vector<8x128xf32>
    %46 = arith.divf %44, %45 : vector<8x128xf32>
    %cst_34 = arith.constant 2.550000e+02 : f32
    %47 = vector.broadcast %cst_34 : f32 to vector<8x128xf32>
    %48 = arith.mulf %46, %47 : vector<8x128xf32>
    %c0_35 = arith.constant 0 : index
    %c0_36 = arith.constant 0 : index
    %49 = vector.load %arg14[%c0_35, %c0_36] : memref<8x128xf32, #tpu.memory_space<vmem>>, vector<8x128xf32>
    tpu.vector_store %arg14[%c0_35, %c0_36], %48 {strides = array<i32>} : memref<8x128xf32, #tpu.memory_space<vmem>>, vector<8x128xf32>,
    return
  }
  func.func @transform_0(%arg0: i32) -> (i32, i32) {
    %c0_i32 = arith.constant 0 : i32
    %c0_i32_0 = arith.constant 0 : i32
    return %arg0, %c0_i32 : i32, i32
  }
  func.func @transform_1(%arg0: i32) -> (i32, i32) {
    %c0_i32 = arith.constant 0 : i32
    %c0_i32_0 = arith.constant 0 : i32
    return %arg0, %c0_i32 : i32, i32
  }
  func.func @transform_2(%arg0: i32) -> (i32, i32) {
    %c0_i32 = arith.constant 0 : i32
    %c0_i32_0 = arith.constant 0 : i32
    return %arg0, %c0_i32 : i32, i32
  }
  func.func @transform_3(%arg0: i32) -> (i32, i32) {
    %c0_i32 = arith.constant 0 : i32
    %c0_i32_0 = arith.constant 0 : i32
    %c0_i32_1 = arith.constant 0 : i32
    return %c0_i32, %c0_i32_0 : i32, i32
  }
  func.func @transform_4(%arg0: i32) -> (i32, i32) {
    %c0_i32 = arith.constant 0 : i32
    %c0_i32_0 = arith.constant 0 : i32
    %c0_i32_1 = arith.constant 0 : i32
    return %c0_i32, %c0_i32_0 : i32, i32
  }
  func.func @transform_5(%arg0: i32) -> (i32, i32) {
    %c0_i32 = arith.constant 0 : i32
    %c0_i32_0 = arith.constant 0 : i32
    %c0_i32_1 = arith.constant 0 : i32
    return %c0_i32, %c0_i32_0 : i32, i32
  }
  func.func @transform_6(%arg0: i32) -> (i32, i32) {
    %c0_i32 = arith.constant 0 : i32
    %c0_i32_0 = arith.constant 0 : i32
    %c0_i32_1 = arith.constant 0 : i32
    return %c0_i32, %c0_i32_0 : i32, i32
  }
  func.func @transform_7(%arg0: i32) -> (i32, i32) {
    %c0_i32 = arith.constant 0 : i32
    %c0_i32_0 = arith.constant 0 : i32
    %c0_i32_1 = arith.constant 0 : i32
    return %c0_i32, %c0_i32_0 : i32, i32
  }
  func.func @transform_8(%arg0: i32) -> (i32, i32) {
    %c0_i32 = arith.constant 0 : i32
    %c0_i32_0 = arith.constant 0 : i32
    %c0_i32_1 = arith.constant 0 : i32
    return %c0_i32, %c0_i32_0 : i32, i32
  }
  func.func @transform_9(%arg0: i32) -> (i32, i32) {
    %c0_i32 = arith.constant 0 : i32
    %c0_i32_0 = arith.constant 0 : i32
    %c0_i32_1 = arith.constant 0 : i32
    return %c0_i32, %c0_i32_0 : i32, i32
  }
  func.func @transform_10(%arg0: i32) -> (i32, i32) {
    %c0_i32 = arith.constant 0 : i32
    %c0_i32_0 = arith.constant 0 : i32
    %c0_i32_1 = arith.constant 0 : i32
    return %c0_i32, %c0_i32_0 : i32, i32
  }
  func.func @transform_11(%arg0: i32) -> (i32, i32) {
    %c0_i32 = arith.constant 0 : i32
    %c0_i32_0 = arith.constant 0 : i32
    %c0_i32_1 = arith.constant 0 : i32
    return %c0_i32, %c0_i32_0 : i32, i32
  }
  func.func @transform_12(%arg0: i32) -> (i32, i32) {
    %c0_i32 = arith.constant 0 : i32
    %c0_i32_0 = arith.constant 0 : i32
    %c0_i32_1 = arith.constant 0 : i32
    return %c0_i32, %c0_i32_0 : i32, i32
  }
  func.func @transform_13(%arg0: i32) -> (i32, i32) {
    %c0_i32 = arith.constant 0 : i32
    %c0_i32_0 = arith.constant 0 : i32
    return %c0_i32, %arg0 : i32, i32
  }
}

</mosaic_0001>

<llo_original>
// kernel: rgb_prediction_forward.1
$region0: #{rgb_prediction_forward.1}
  #allocation0 [shape = 'u32[]', space=smem, size = 0x4, offset = 0x4, fixed_abs, tag = 'smem constant byte address 0x4 - core index']
  #allocation1 [shape = 'u32[72,128]{1,0:T(1,128)}', space=vmem, size = 0x9000, scoped, tag = 'internal scratch']
  %s0 = inlined_call_operand.vmem [shape: f32[128,64], index: 0, kind: input, shape index: {}]
  %s1 = inlined_call_operand.vmem [shape: f32[128,64], index: 1, kind: input, shape index: {}]
  %s2 = inlined_call_operand.vmem [shape: f32[128,10], index: 2, kind: input, shape index: {}]
  %s3 = inlined_call_operand.vmem [shape: bf16[10,32], index: 3, kind: input, shape index: {}]
  %s4 = inlined_call_operand.vmem [shape: f32[1,32], index: 4, kind: input, shape index: {}]
  %s5 = inlined_call_operand.vmem [shape: bf16[64,256], index: 5, kind: input, shape index: {}]
  %s6 = inlined_call_operand.vmem [shape: bf16[32,256], index: 6, kind: input, shape index: {}]
  %s7 = inlined_call_operand.vmem [shape: bf16[64,256], index: 7, kind: input, shape index: {}]
  %s8 = inlined_call_operand.vmem [shape: f32[1,256], index: 8, kind: input, shape index: {}]
  %s9 = inlined_call_operand.vmem [shape: bf16[256,128], index: 9, kind: input, shape index: {}]
  %s10 = inlined_call_operand.vmem [shape: f32[1,128], index: 10, kind: input, shape index: {}]
  %s11 = inlined_call_operand.vmem [shape: bf16[8,128], index: 11, kind: input, shape index: {}]
  %s12 = inlined_call_operand.vmem [shape: f32[8,1], index: 12, kind: input, shape index: {}]
  %s13 = inlined_call_operand.vmem [shape: f32[8,128], index: 13, kind: output, shape index: {}]
  %s14 = sld [smem:[#allocation0]]
  $region62: #{rgb_prediction_forward.1} parent=0
    _
  %s16 = ssub.s32 1, %s14
  %s17 = scalar_select 0, %s16, %s14
  // Predicated region
  $region2: #{rgb_prediction_forward.1} parent=0 // pred_check
    _
  $region3: #{rgb_prediction_forward.1} parent=0 // pred_check_branch
    %19 = sbr.rel (0) target = $region5
  $region4: #{rgb_prediction_forward.1} parent=0 // pred_region
    _
  $region5: #{rgb_prediction_forward.1} parent=0 // pred_fallthru
    _
  // Predicated region
  $region6: #{rgb_prediction_forward.1} parent=0 // pred_check
    _
  $region7: #{rgb_prediction_forward.1} parent=0 // pred_check_branch
    %21 = sbr.rel (0) target = $region9
  $region8: #{rgb_prediction_forward.1} parent=0 // pred_region
    _
  $region9: #{rgb_prediction_forward.1} parent=0 // pred_fallthru
    _
  // Predicated region
  $region10: #{rgb_prediction_forward.1} parent=0 // pred_check
    _
  $region11: #{rgb_prediction_forward.1} parent=0 // pred_check_branch
    %23 = sbr.rel (0) target = $region13
  $region12: #{rgb_prediction_forward.1} parent=0 // pred_region
    _
  $region13: #{rgb_prediction_forward.1} parent=0 // pred_fallthru
    _
  // Predicated region
  $region14: #{rgb_prediction_forward.1} parent=0 // pred_check
    _
  $region15: #{rgb_prediction_forward.1} parent=0 // pred_check_branch
    %25 = sbr.rel (0) target = $region17
  $region16: #{rgb_prediction_forward.1} parent=0 // pred_region
    _
  $region17: #{rgb_prediction_forward.1} parent=0 // pred_fallthru
    _
  // Predicated region
  $region18: #{rgb_prediction_forward.1} parent=0 // pred_check
    _
  $region19: #{rgb_prediction_forward.1} parent=0 // pred_check_branch
    %27 = sbr.rel (0) target = $region21
  $region20: #{rgb_prediction_forward.1} parent=0 // pred_region
    _
  $region21: #{rgb_prediction_forward.1} parent=0 // pred_fallthru
    _
  // Predicated region
  $region22: #{rgb_prediction_forward.1} parent=0 // pred_check
    _
  $region23: #{rgb_prediction_forward.1} parent=0 // pred_check_branch
    %29 = sbr.rel (0) target = $region25
  $region24: #{rgb_prediction_forward.1} parent=0 // pred_region
    _
  $region25: #{rgb_prediction_forward.1} parent=0 // pred_fallthru
    _
  // Predicated region
  $region26: #{rgb_prediction_forward.1} parent=0 // pred_check
    _
  $region27: #{rgb_prediction_forward.1} parent=0 // pred_check_branch
    %31 = sbr.rel (0) target = $region29
  $region28: #{rgb_prediction_forward.1} parent=0 // pred_region
    _
  $region29: #{rgb_prediction_forward.1} parent=0 // pred_fallthru
    _
  // Predicated region
  $region30: #{rgb_prediction_forward.1} parent=0 // pred_check
    _
  $region31: #{rgb_prediction_forward.1} parent=0 // pred_check_branch
    %33 = sbr.rel (0) target = $region33
  $region32: #{rgb_prediction_forward.1} parent=0 // pred_region
    _
  $region33: #{rgb_prediction_forward.1} parent=0 // pred_fallthru
    _
  // Predicated region
  $region34: #{rgb_prediction_forward.1} parent=0 // pred_check
    _
  $region35: #{rgb_prediction_forward.1} parent=0 // pred_check_branch
    %35 = sbr.rel (0) target = $region37
  $region36: #{rgb_prediction_forward.1} parent=0 // pred_region
    _
  $region37: #{rgb_prediction_forward.1} parent=0 // pred_fallthru
    _
  // Predicated region
  $region38: #{rgb_prediction_forward.1} parent=0 // pred_check
    _
  $region39: #{rgb_prediction_forward.1} parent=0 // pred_check_branch
    %37 = sbr.rel (0) target = $region41
  $region40: #{rgb_prediction_forward.1} parent=0 // pred_region
    _
  $region41: #{rgb_prediction_forward.1} parent=0 // pred_fallthru
    _
  // Predicated region
  $region42: #{rgb_prediction_forward.1} parent=0 // pred_check
    _
  $region43: #{rgb_prediction_forward.1} parent=0 // pred_check_branch
    %39 = sbr.rel (0) target = $region45
  $region44: #{rgb_prediction_forward.1} parent=0 // pred_region
    _
  $region45: #{rgb_prediction_forward.1} parent=0 // pred_fallthru
    _
  // Predicated region
  $region46: #{rgb_prediction_forward.1} parent=0 // pred_check
    _
  $region47: #{rgb_prediction_forward.1} parent=0 // pred_check_branch
    %41 = sbr.rel (0) target = $region49
  $region48: #{rgb_prediction_forward.1} parent=0 // pred_region
    _
  $region49: #{rgb_prediction_forward.1} parent=0 // pred_fallthru
    _
  // Predicated region
  $region50: #{rgb_prediction_forward.1} parent=0 // pred_check
    _
  $region51: #{rgb_prediction_forward.1} parent=0 // pred_check_branch
    %43 = sbr.rel (0) target = $region53
  $region52: #{rgb_prediction_forward.1} parent=0 // pred_region
    _
  $region53: #{rgb_prediction_forward.1} parent=0 // pred_fallthru
    _
  %v45 = vld [vmem:[%s0] sm:$0xff]
  %v46 = vld [vmem:[%s0 + $0x8] sm:$0xff]
  %v47 = vld [vmem:[%s0 + $0x10] sm:$0xff]
  %v48 = vld [vmem:[%s0 + $0x18] sm:$0xff]
  %v49 = vld [vmem:[%s0 + $0x20] sm:$0xff]
  %v50 = vld [vmem:[%s0 + $0x28] sm:$0xff]
  %v51 = vld [vmem:[%s0 + $0x30] sm:$0xff]
  %v52 = vld [vmem:[%s0 + $0x38] sm:$0xff]
  %v53 = vld [vmem:[%s0 + $0x40] sm:$0xff]
  %v54 = vld [vmem:[%s0 + $0x48] sm:$0xff]
  %v55 = vld [vmem:[%s0 + $0x50] sm:$0xff]
  %v56 = vld [vmem:[%s0 + $0x58] sm:$0xff]
  %v57 = vld [vmem:[%s0 + $0x60] sm:$0xff]
  %v58 = vld [vmem:[%s0 + $0x68] sm:$0xff]
  %v59 = vld [vmem:[%s0 + $0x70] sm:$0xff]
  %v60 = vld [vmem:[%s0 + $0x78] sm:$0xff]
  %v61 = vpack.c.bf16 %v46, %v45
  %v62 = vpack.c.bf16 %v48, %v47
  %v63 = vpack.c.bf16 %v50, %v49
  %v64 = vpack.c.bf16 %v52, %v51
  %v65 = vpack.c.bf16 %v54, %v53
  %v66 = vpack.c.bf16 %v56, %v55
  %v67 = vpack.c.bf16 %v58, %v57
  %v68 = vpack.c.bf16 %v60, %v59
  %v69 = vld [vmem:[%s1] sm:$0xff]
  %v70 = vld [vmem:[%s1 + $0x8] sm:$0xff]
  %v71 = vld [vmem:[%s1 + $0x10] sm:$0xff]
  %v72 = vld [vmem:[%s1 + $0x18] sm:$0xff]
  %v73 = vld [vmem:[%s1 + $0x20] sm:$0xff]
  %v74 = vld [vmem:[%s1 + $0x28] sm:$0xff]
  %v75 = vld [vmem:[%s1 + $0x30] sm:$0xff]
  %v76 = vld [vmem:[%s1 + $0x38] sm:$0xff]
  %v77 = vld [vmem:[%s1 + $0x40] sm:$0xff]
  %v78 = vld [vmem:[%s1 + $0x48] sm:$0xff]
  %v79 = vld [vmem:[%s1 + $0x50] sm:$0xff]
  %v80 = vld [vmem:[%s1 + $0x58] sm:$0xff]
  %v81 = vld [vmem:[%s1 + $0x60] sm:$0xff]
  %v82 = vld [vmem:[%s1 + $0x68] sm:$0xff]
  %v83 = vld [vmem:[%s1 + $0x70] sm:$0xff]
  %v84 = vld [vmem:[%s1 + $0x78] sm:$0xff]
  %v85 = vpack.c.bf16 %v70, %v69
  %v86 = vpack.c.bf16 %v72, %v71
  %v87 = vpack.c.bf16 %v74, %v73
  %v88 = vpack.c.bf16 %v76, %v75
  %v89 = vpack.c.bf16 %v78, %v77
  %v90 = vpack.c.bf16 %v80, %v79
  %v91 = vpack.c.bf16 %v82, %v81
  %v92 = vpack.c.bf16 %v84, %v83
  %v93 = vld [vmem:[%s2] sm:$0xff]
  %v94 = vld [vmem:[%s2 + $0x8] sm:$0xff]
  %v95 = vld [vmem:[%s2 + $0x10] sm:$0xff]
  %v96 = vld [vmem:[%s2 + $0x18] sm:$0xff]
  %v97 = vld [vmem:[%s2 + $0x20] sm:$0xff]
  %v98 = vld [vmem:[%s2 + $0x28] sm:$0xff]
  %v99 = vld [vmem:[%s2 + $0x30] sm:$0xff]
  %v100 = vld [vmem:[%s2 + $0x38] sm:$0xff]
  %v101 = vld [vmem:[%s2 + $0x40] sm:$0xff]
  %v102 = vld [vmem:[%s2 + $0x48] sm:$0xff]
  %v103 = vld [vmem:[%s2 + $0x50] sm:$0xff]
  %v104 = vld [vmem:[%s2 + $0x58] sm:$0xff]
  %v105 = vld [vmem:[%s2 + $0x60] sm:$0xff]
  %v106 = vld [vmem:[%s2 + $0x68] sm:$0xff]
  %v107 = vld [vmem:[%s2 + $0x70] sm:$0xff]
  %v108 = vld [vmem:[%s2 + $0x78] sm:$0xff]
  %v109 = vpack.c.bf16 %v94, %v93
  %v110 = vpack.c.bf16 %v96, %v95
  %v111 = vpack.c.bf16 %v98, %v97
  %v112 = vpack.c.bf16 %v100, %v99
  %v113 = vpack.c.bf16 %v102, %v101
  %v114 = vpack.c.bf16 %v104, %v103
  %v115 = vpack.c.bf16 %v106, %v105
  %v116 = vpack.c.bf16 %v108, %v107
  %v117 = vld [vmem:[%s3] sm:$0xf]
  %v118 = vld [vmem:[%s3 + $0x4] sm:$0x1]
  %v119 = vld [vmem:[%s4] sm:$0x1]
  %v121 = vperm.slane %v119, 0
  %v125 = vunpack.c.l.b16 %v117
  %v126 = vunpack.c.l.b16 %v118
  %v127 = vpack.c.b16 %v126, %v125
  %vm128 = vcmask 80896
  %v130 = vsel %vm128, %v109, 0
  %v133 = vsel %vm128, %v110, 0
  %v136 = vsel %vm128, %v111, 0
  %v139 = vsel %vm128, %v112, 0
  %v142 = vsel %vm128, %v113, 0
  %v145 = vsel %vm128, %v114, 0
  %v148 = vsel %vm128, %v115, 0
  %v151 = vsel %vm128, %v116, 0
  %vm153 = vcmask 1044480
  %v155 = vsel %vm153, %v127, 0
  %157 = vmatpush.bf16.msra.mxu0 0
  %158 = vmatpush.bf16.msra.mxu0 0
  %159 = vmatpush.bf16.msra.mxu0 0
  %160 = vmatpush.bf16.msra.mxu0 0
  %161 = vmatpush.bf16.msra.mxu0 0
  %162 = vmatpush.bf16.msra.mxu0 0
  %163 = vmatpush.bf16.msra.mxu0 0
  %164 = vmatpush.bf16.msra.mxu0 %v155
  %165 = vmatmul.bf16.gmra.mxu0 %v130
  %v166 = vpop.f32.mrf.mxu0
  %v167 = vadd.f32 %v121, %v166
  %v168 = vpop.f32.mrf.mxu0
  %v169 = vadd.f32 %v121, %v168
  %170 = vmatmul.bf16.gmra.mxu0 %v133
  %v171 = vpop.f32.mrf.mxu0
  %v172 = vadd.f32 %v121, %v171
  %v173 = vpop.f32.mrf.mxu0
  %v174 = vadd.f32 %v121, %v173
  %175 = vmatmul.bf16.gmra.mxu0 %v136
  %v176 = vpop.f32.mrf.mxu0
  %v177 = vadd.f32 %v121, %v176
  %v178 = vpop.f32.mrf.mxu0
  %v179 = vadd.f32 %v121, %v178
  %180 = vmatmul.bf16.gmra.mxu0 %v139
  %v181 = vpop.f32.mrf.mxu0
  %v182 = vadd.f32 %v121, %v181
  %v183 = vpop.f32.mrf.mxu0
  %v184 = vadd.f32 %v121, %v183
  %185 = vmatmul.bf16.gmra.mxu0 %v142
  %v186 = vpop.f32.mrf.mxu0
  %v187 = vadd.f32 %v121, %v186
  %v188 = vpop.f32.mrf.mxu0
  %v189 = vadd.f32 %v121, %v188
  %190 = vmatmul.bf16.gmra.mxu0 %v145
  %v191 = vpop.f32.mrf.mxu0
  %v192 = vadd.f32 %v121, %v191
  %v193 = vpop.f32.mrf.mxu0
  %v194 = vadd.f32 %v121, %v193
  %195 = vmatmul.bf16.gmra.mxu0 %v148
  %v196 = vpop.f32.mrf.mxu0
  %v197 = vadd.f32 %v121, %v196
  %v198 = vpop.f32.mrf.mxu0
  %v199 = vadd.f32 %v121, %v198
  %200 = vmatmul.bf16.gmra.mxu0 %v151
  %v201 = vpop.f32.mrf.mxu0
  %v202 = vadd.f32 %v121, %v201
  %v203 = vpop.f32.mrf.mxu0
  %v204 = vadd.f32 %v121, %v203
  %205 = vdwg.mxu0
  %v206 = vmax.f32 %v167, 0.0
  %v207 = vmax.f32 %v169, 0.0
  %v208 = vmax.f32 %v172, 0.0
  %v209 = vmax.f32 %v174, 0.0
  %v210 = vmax.f32 %v177, 0.0
  %v211 = vmax.f32 %v179, 0.0
  %v212 = vmax.f32 %v182, 0.0
  %v213 = vmax.f32 %v184, 0.0
  %v214 = vmax.f32 %v187, 0.0
  %v215 = vmax.f32 %v189, 0.0
  %v216 = vmax.f32 %v192, 0.0
  %v217 = vmax.f32 %v194, 0.0
  %v218 = vmax.f32 %v197, 0.0
  %v219 = vmax.f32 %v199, 0.0
  %v220 = vmax.f32 %v202, 0.0
  %v221 = vmax.f32 %v204, 0.0
  %v222 = vpack.c.bf16 %v207, %v206
  %v223 = vpack.c.bf16 %v209, %v208
  %v224 = vpack.c.bf16 %v211, %v210
  %v225 = vpack.c.bf16 %v213, %v212
  %v226 = vpack.c.bf16 %v215, %v214
  %v227 = vpack.c.bf16 %v217, %v216
  %v228 = vpack.c.bf16 %v219, %v218
  %v229 = vpack.c.bf16 %v221, %v220
  %v230 = vld [vmem:[%s5] sm:$0xff]
  %v231 = vld [vmem:[%s5 + $0x8] sm:$0xff]
  %v232 = vld [vmem:[%s5 + $0x10] sm:$0xff]
  %v233 = vld [vmem:[%s5 + $0x18] sm:$0xff]
  %v234 = vld [vmem:[%s5 + $0x20] sm:$0xff]
  %v235 = vld [vmem:[%s5 + $0x28] sm:$0xff]
  %v236 = vld [vmem:[%s5 + $0x30] sm:$0xff]
  %v237 = vld [vmem:[%s5 + $0x38] sm:$0xff]
  %v238 = vld [vmem:[%s6] sm:$0xff]
  %v239 = vld [vmem:[%s6 + $0x8] sm:$0xff]
  %v240 = vld [vmem:[%s6 + $0x10] sm:$0xff]
  %v241 = vld [vmem:[%s6 + $0x18] sm:$0xff]
  %v246 = vunpack.c.l.b16 %v238
  %v247 = vunpack.c.h.b16 %v238
  %v248 = vunpack.c.l.b16 %v239
  %v249 = vunpack.c.h.b16 %v239
  %v250 = vunpack.c.l.b16 %v240
  %v251 = vunpack.c.h.b16 %v240
  %v252 = vunpack.c.l.b16 %v241
  %v253 = vunpack.c.h.b16 %v241
  %v254 = vpack.c.b16 %v248, %v246
  %v255 = vpack.c.b16 %v249, %v247
  %v256 = vpack.c.b16 %v252, %v250
  %v257 = vpack.c.b16 %v253, %v251
  %vm262 = vcmask 261120
  %v264 = vsel %vm262, %v222, 0
  %v267 = vsel %vm262, %v223, 0
  %v270 = vsel %vm262, %v224, 0
  %v273 = vsel %vm262, %v225, 0
  %v276 = vsel %vm262, %v226, 0
  %v279 = vsel %vm262, %v227, 0
  %v282 = vsel %vm262, %v228, 0
  %v285 = vsel %vm262, %v229, 0
  %287 = vmatpush.bf16.msra.mxu0 0
  %288 = vmatpush.bf16.msra.mxu0 0
  %289 = vmatpush.bf16.msra.mxu0 0
  %290 = vmatpush.bf16.msra.mxu0 0
  %291 = vmatpush.bf16.msra.mxu0 0
  %292 = vmatpush.bf16.msra.mxu0 0
  %293 = vmatpush.bf16.msra.mxu0 %v256
  %294 = vmatpush.bf16.msra.mxu0 %v254
  %295 = vmatmul.bf16.gmra.mxu0 %v264
  %v296 = vpop.f32.mrf.mxu0
  %v297 = vadd.f32 0.0, %v296
  %v298 = vpop.f32.mrf.mxu0
  %v299 = vadd.f32 0.0, %v298
  %300 = vmatmul.bf16.gmra.mxu0 %v267
  %v301 = vpop.f32.mrf.mxu0
  %v302 = vadd.f32 0.0, %v301
  %v303 = vpop.f32.mrf.mxu0
  %v304 = vadd.f32 0.0, %v303
  %305 = vmatmul.bf16.gmra.mxu0 %v270
  %v306 = vpop.f32.mrf.mxu0
  %v307 = vadd.f32 0.0, %v306
  %v308 = vpop.f32.mrf.mxu0
  %v309 = vadd.f32 0.0, %v308
  %310 = vmatmul.bf16.gmra.mxu0 %v273
  %v311 = vpop.f32.mrf.mxu0
  %v312 = vadd.f32 0.0, %v311
  %v313 = vpop.f32.mrf.mxu0
  %v314 = vadd.f32 0.0, %v313
  %315 = vmatmul.bf16.gmra.mxu0 %v276
  %v316 = vpop.f32.mrf.mxu0
  %v317 = vadd.f32 0.0, %v316
  %v318 = vpop.f32.mrf.mxu0
  %v319 = vadd.f32 0.0, %v318
  %320 = vmatmul.bf16.gmra.mxu0 %v279
  %v321 = vpop.f32.mrf.mxu0
  %v322 = vadd.f32 0.0, %v321
  %v323 = vpop.f32.mrf.mxu0
  %v324 = vadd.f32 0.0, %v323
  %325 = vmatmul.bf16.gmra.mxu0 %v282
  %v326 = vpop.f32.mrf.mxu0
  %v327 = vadd.f32 0.0, %v326
  %v328 = vpop.f32.mrf.mxu0
  %v329 = vadd.f32 0.0, %v328
  %330 = vmatmul.bf16.gmra.mxu0 %v285
  %v331 = vpop.f32.mrf.mxu0
  %v332 = vadd.f32 0.0, %v331
  %v333 = vpop.f32.mrf.mxu0
  %v334 = vadd.f32 0.0, %v333
  %335 = vdwg.mxu0
  %336 = vmatpush.bf16.msra.mxu0 0
  %337 = vmatpush.bf16.msra.mxu0 0
  %338 = vmatpush.bf16.msra.mxu0 0
  %339 = vmatpush.bf16.msra.mxu0 0
  %340 = vmatpush.bf16.msra.mxu0 0
  %341 = vmatpush.bf16.msra.mxu0 0
  %342 = vmatpush.bf16.msra.mxu0 %v257
  %343 = vmatpush.bf16.msra.mxu0 %v255
  %344 = vmatmul.bf16.gmra.mxu0 %v264
  %v345 = vpop.f32.mrf.mxu0
  %v346 = vadd.f32 0.0, %v345
  %v347 = vpop.f32.mrf.mxu0
  %v348 = vadd.f32 0.0, %v347
  %349 = vmatmul.bf16.gmra.mxu0 %v267
  %v350 = vpop.f32.mrf.mxu0
  %v351 = vadd.f32 0.0, %v350
  %v352 = vpop.f32.mrf.mxu0
  %v353 = vadd.f32 0.0, %v352
  %354 = vmatmul.bf16.gmra.mxu0 %v270
  %v355 = vpop.f32.mrf.mxu0
  %v356 = vadd.f32 0.0, %v355
  %v357 = vpop.f32.mrf.mxu0
  %v358 = vadd.f32 0.0, %v357
  %359 = vmatmul.bf16.gmra.mxu0 %v273
  %v360 = vpop.f32.mrf.mxu0
  %v361 = vadd.f32 0.0, %v360
  %v362 = vpop.f32.mrf.mxu0
  %v363 = vadd.f32 0.0, %v362
  %364 = vmatmul.bf16.gmra.mxu0 %v276
  %v365 = vpop.f32.mrf.mxu0
  %v366 = vadd.f32 0.0, %v365
  %v367 = vpop.f32.mrf.mxu0
  %v368 = vadd.f32 0.0, %v367
  %369 = vmatmul.bf16.gmra.mxu0 %v279
  %v370 = vpop.f32.mrf.mxu0
  %v371 = vadd.f32 0.0, %v370
  %v372 = vpop.f32.mrf.mxu0
  %v373 = vadd.f32 0.0, %v372
  %374 = vmatmul.bf16.gmra.mxu0 %v282
  %v375 = vpop.f32.mrf.mxu0
  %v376 = vadd.f32 0.0, %v375
  %v377 = vpop.f32.mrf.mxu0
  %v378 = vadd.f32 0.0, %v377
  %379 = vmatmul.bf16.gmra.mxu0 %v285
  %v380 = vpop.f32.mrf.mxu0
  %v381 = vadd.f32 0.0, %v380
  %v382 = vpop.f32.mrf.mxu0
  %v383 = vadd.f32 0.0, %v382
  %384 = vdwg.mxu0
  %v393 = vunpack.c.l.b16 %v230
  %v394 = vunpack.c.h.b16 %v230
  %v395 = vunpack.c.l.b16 %v231
  %v396 = vunpack.c.h.b16 %v231
  %v397 = vunpack.c.l.b16 %v232
  %v398 = vunpack.c.h.b16 %v232
  %v399 = vunpack.c.l.b16 %v233
  %v400 = vunpack.c.h.b16 %v233
  %v401 = vunpack.c.l.b16 %v234
  %v402 = vunpack.c.h.b16 %v234
  %v403 = vunpack.c.l.b16 %v235
  %v404 = vunpack.c.h.b16 %v235
  %v405 = vunpack.c.l.b16 %v236
  %v406 = vunpack.c.h.b16 %v236
  %v407 = vunpack.c.l.b16 %v237
  %v408 = vunpack.c.h.b16 %v237
  %v409 = vpack.c.b16 %v395, %v393
  %v410 = vpack.c.b16 %v396, %v394
  %v411 = vpack.c.b16 %v399, %v397
  %v412 = vpack.c.b16 %v400, %v398
  %v413 = vpack.c.b16 %v403, %v401
  %v414 = vpack.c.b16 %v404, %v402
  %v415 = vpack.c.b16 %v407, %v405
  %v416 = vpack.c.b16 %v408, %v406
  %vm425 = vcmask 523264
  %v427 = vsel %vm425, %v61, 0
  %v430 = vsel %vm425, %v62, 0
  %v433 = vsel %vm425, %v63, 0
  %v436 = vsel %vm425, %v64, 0
  %v439 = vsel %vm425, %v65, 0
  %v442 = vsel %vm425, %v66, 0
  %v445 = vsel %vm425, %v67, 0
  %v448 = vsel %vm425, %v68, 0
  %450 = vmatpush.bf16.msra.mxu0 0
  %451 = vmatpush.bf16.msra.mxu0 0
  %452 = vmatpush.bf16.msra.mxu0 0
  %453 = vmatpush.bf16.msra.mxu0 0
  %454 = vmatpush.bf16.msra.mxu0 %v415
  %455 = vmatpush.bf16.msra.mxu0 %v413
  %456 = vmatpush.bf16.msra.mxu0 %v411
  %457 = vmatpush.bf16.msra.mxu0 %v409
  %458 = vmatmul.bf16.gmra.mxu0 %v427
  %v459 = vpop.f32.mrf.mxu0
  %v460 = vadd.f32 %v297, %v459
  %v461 = vpop.f32.mrf.mxu0
  %v462 = vadd.f32 %v299, %v461
  %463 = vmatmul.bf16.gmra.mxu0 %v430
  %v464 = vpop.f32.mrf.mxu0
  %v465 = vadd.f32 %v302, %v464
  %v466 = vpop.f32.mrf.mxu0
  %v467 = vadd.f32 %v304, %v466
  %468 = vmatmul.bf16.gmra.mxu0 %v433
  %v469 = vpop.f32.mrf.mxu0
  %v470 = vadd.f32 %v307, %v469
  %v471 = vpop.f32.mrf.mxu0
  %v472 = vadd.f32 %v309, %v471
  %473 = vmatmul.bf16.gmra.mxu0 %v436
  %v474 = vpop.f32.mrf.mxu0
  %v475 = vadd.f32 %v312, %v474
  %v476 = vpop.f32.mrf.mxu0
  %v477 = vadd.f32 %v314, %v476
  %478 = vmatmul.bf16.gmra.mxu0 %v439
  %v479 = vpop.f32.mrf.mxu0
  %v480 = vadd.f32 %v317, %v479
  %v481 = vpop.f32.mrf.mxu0
  %v482 = vadd.f32 %v319, %v481
  %483 = vmatmul.bf16.gmra.mxu0 %v442
  %v484 = vpop.f32.mrf.mxu0
  %v485 = vadd.f32 %v322, %v484
  %v486 = vpop.f32.mrf.mxu0
  %v487 = vadd.f32 %v324, %v486
  %488 = vmatmul.bf16.gmra.mxu0 %v445
  %v489 = vpop.f32.mrf.mxu0
  %v490 = vadd.f32 %v327, %v489
  %v491 = vpop.f32.mrf.mxu0
  %v492 = vadd.f32 %v329, %v491
  %493 = vmatmul.bf16.gmra.mxu0 %v448
  %v494 = vpop.f32.mrf.mxu0
  %v495 = vadd.f32 %v332, %v494
  %v496 = vpop.f32.mrf.mxu0
  %v497 = vadd.f32 %v334, %v496
  %498 = vdwg.mxu0
  %499 = vmatpush.bf16.msra.mxu0 0
  %500 = vmatpush.bf16.msra.mxu0 0
  %501 = vmatpush.bf16.msra.mxu0 0
  %502 = vmatpush.bf16.msra.mxu0 0
  %503 = vmatpush.bf16.msra.mxu0 %v416
  %504 = vmatpush.bf16.msra.mxu0 %v414
  %505 = vmatpush.bf16.msra.mxu0 %v412
  %506 = vmatpush.bf16.msra.mxu0 %v410
  %507 = vmatmul.bf16.gmra.mxu0 %v427
  %v508 = vpop.f32.mrf.mxu0
  %v509 = vadd.f32 %v346, %v508
  %v510 = vpop.f32.mrf.mxu0
  %v511 = vadd.f32 %v348, %v510
  %512 = vmatmul.bf16.gmra.mxu0 %v430
  %v513 = vpop.f32.mrf.mxu0
  %v514 = vadd.f32 %v351, %v513
  %v515 = vpop.f32.mrf.mxu0
  %v516 = vadd.f32 %v353, %v515
  %517 = vmatmul.bf16.gmra.mxu0 %v433
  %v518 = vpop.f32.mrf.mxu0
  %v519 = vadd.f32 %v356, %v518
  %v520 = vpop.f32.mrf.mxu0
  %v521 = vadd.f32 %v358, %v520
  %522 = vmatmul.bf16.gmra.mxu0 %v436
  %v523 = vpop.f32.mrf.mxu0
  %v524 = vadd.f32 %v361, %v523
  %v525 = vpop.f32.mrf.mxu0
  %v526 = vadd.f32 %v363, %v525
  %527 = vmatmul.bf16.gmra.mxu0 %v439
  %v528 = vpop.f32.mrf.mxu0
  %v529 = vadd.f32 %v366, %v528
  %v530 = vpop.f32.mrf.mxu0
  %v531 = vadd.f32 %v368, %v530
  %532 = vmatmul.bf16.gmra.mxu0 %v442
  %v533 = vpop.f32.mrf.mxu0
  %v534 = vadd.f32 %v371, %v533
  %v535 = vpop.f32.mrf.mxu0
  %v536 = vadd.f32 %v373, %v535
  %537 = vmatmul.bf16.gmra.mxu0 %v445
  %v538 = vpop.f32.mrf.mxu0
  %v539 = vadd.f32 %v376, %v538
  %v540 = vpop.f32.mrf.mxu0
  %v541 = vadd.f32 %v378, %v540
  %542 = vmatmul.bf16.gmra.mxu0 %v448
  %v543 = vpop.f32.mrf.mxu0
  %v544 = vadd.f32 %v381, %v543
  %v545 = vpop.f32.mrf.mxu0
  %v546 = vadd.f32 %v383, %v545
  %547 = vdwg.mxu0
  %v548 = vld [vmem:[%s7] sm:$0xff]
  %v549 = vld [vmem:[%s7 + $0x8] sm:$0xff]
  %v550 = vld [vmem:[%s7 + $0x10] sm:$0xff]
  %v551 = vld [vmem:[%s7 + $0x18] sm:$0xff]
  %v552 = vld [vmem:[%s7 + $0x20] sm:$0xff]
  %v553 = vld [vmem:[%s7 + $0x28] sm:$0xff]
  %v554 = vld [vmem:[%s7 + $0x30] sm:$0xff]
  %v555 = vld [vmem:[%s7 + $0x38] sm:$0xff]
  %v564 = vunpack.c.l.b16 %v548
  %v565 = vunpack.c.h.b16 %v548
  %v566 = vunpack.c.l.b16 %v549
  %v567 = vunpack.c.h.b16 %v549
  %v568 = vunpack.c.l.b16 %v550
  %v569 = vunpack.c.h.b16 %v550
  %v570 = vunpack.c.l.b16 %v551
  %v571 = vunpack.c.h.b16 %v551
  %v572 = vunpack.c.l.b16 %v552
  %v573 = vunpack.c.h.b16 %v552
  %v574 = vunpack.c.l.b16 %v553
  %v575 = vunpack.c.h.b16 %v553
  %v576 = vunpack.c.l.b16 %v554
  %v577 = vunpack.c.h.b16 %v554
  %v578 = vunpack.c.l.b16 %v555
  %v579 = vunpack.c.h.b16 %v555
  %v580 = vpack.c.b16 %v566, %v564
  %v581 = vpack.c.b16 %v567, %v565
  %v582 = vpack.c.b16 %v570, %v568
  %v583 = vpack.c.b16 %v571, %v569
  %v584 = vpack.c.b16 %v574, %v572
  %v585 = vpack.c.b16 %v575, %v573
  %v586 = vpack.c.b16 %v578, %v576
  %v587 = vpack.c.b16 %v579, %v577
  %v597 = vsel %vm425, %v85, 0
  %v600 = vsel %vm425, %v86, 0
  %v603 = vsel %vm425, %v87, 0
  %v606 = vsel %vm425, %v88, 0
  %v609 = vsel %vm425, %v89, 0
  %v612 = vsel %vm425, %v90, 0
  %v615 = vsel %vm425, %v91, 0
  %v618 = vsel %vm425, %v92, 0
  %620 = vmatpush.bf16.msra.mxu0 0
  %621 = vmatpush.bf16.msra.mxu0 0
  %622 = vmatpush.bf16.msra.mxu0 0
  %623 = vmatpush.bf16.msra.mxu0 0
  %624 = vmatpush.bf16.msra.mxu0 %v586
  %625 = vmatpush.bf16.msra.mxu0 %v584
  %626 = vmatpush.bf16.msra.mxu0 %v582
  %627 = vmatpush.bf16.msra.mxu0 %v580
  %628 = vmatmul.bf16.gmra.mxu0 %v597
  %v629 = vpop.f32.mrf.mxu0
  %v630 = vadd.f32 0.0, %v629
  %v631 = vpop.f32.mrf.mxu0
  %v632 = vadd.f32 0.0, %v631
  %633 = vmatmul.bf16.gmra.mxu0 %v600
  %v634 = vpop.f32.mrf.mxu0
  %v635 = vadd.f32 0.0, %v634
  %v636 = vpop.f32.mrf.mxu0
  %v637 = vadd.f32 0.0, %v636
  %638 = vmatmul.bf16.gmra.mxu0 %v603
  %v639 = vpop.f32.mrf.mxu0
  %v640 = vadd.f32 0.0, %v639
  %v641 = vpop.f32.mrf.mxu0
  %v642 = vadd.f32 0.0, %v641
  %643 = vmatmul.bf16.gmra.mxu0 %v606
  %v644 = vpop.f32.mrf.mxu0
  %v645 = vadd.f32 0.0, %v644
  %v646 = vpop.f32.mrf.mxu0
  %v647 = vadd.f32 0.0, %v646
  %648 = vmatmul.bf16.gmra.mxu0 %v609
  %v649 = vpop.f32.mrf.mxu0
  %v650 = vadd.f32 0.0, %v649
  %v651 = vpop.f32.mrf.mxu0
  %v652 = vadd.f32 0.0, %v651
  %653 = vmatmul.bf16.gmra.mxu0 %v612
  %v654 = vpop.f32.mrf.mxu0
  %v655 = vadd.f32 0.0, %v654
  %v656 = vpop.f32.mrf.mxu0
  %v657 = vadd.f32 0.0, %v656
  %658 = vmatmul.bf16.gmra.mxu0 %v615
  %v659 = vpop.f32.mrf.mxu0
  %v660 = vadd.f32 0.0, %v659
  %v661 = vpop.f32.mrf.mxu0
  %v662 = vadd.f32 0.0, %v661
  %663 = vmatmul.bf16.gmra.mxu0 %v618
  %v664 = vpop.f32.mrf.mxu0
  %v665 = vadd.f32 0.0, %v664
  %v666 = vpop.f32.mrf.mxu0
  %v667 = vadd.f32 0.0, %v666
  %668 = vdwg.mxu0
  %669 = vmatpush.bf16.msra.mxu0 0
  %670 = vmatpush.bf16.msra.mxu0 0
  %671 = vmatpush.bf16.msra.mxu0 0
  %672 = vmatpush.bf16.msra.mxu0 0
  %673 = vmatpush.bf16.msra.mxu0 %v587
  %674 = vmatpush.bf16.msra.mxu0 %v585
  %675 = vmatpush.bf16.msra.mxu0 %v583
  %676 = vmatpush.bf16.msra.mxu0 %v581
  %677 = vmatmul.bf16.gmra.mxu0 %v597
  %v678 = vpop.f32.mrf.mxu0
  %v679 = vadd.f32 0.0, %v678
  %v680 = vpop.f32.mrf.mxu0
  %v681 = vadd.f32 0.0, %v680
  %682 = vmatmul.bf16.gmra.mxu0 %v600
  %v683 = vpop.f32.mrf.mxu0
  %v684 = vadd.f32 0.0, %v683
  %v685 = vpop.f32.mrf.mxu0
  %v686 = vadd.f32 0.0, %v685
  %687 = vmatmul.bf16.gmra.mxu0 %v603
  %v688 = vpop.f32.mrf.mxu0
  %v689 = vadd.f32 0.0, %v688
  %v690 = vpop.f32.mrf.mxu0
  %v691 = vadd.f32 0.0, %v690
  %692 = vmatmul.bf16.gmra.mxu0 %v606
  %v693 = vpop.f32.mrf.mxu0
  %v694 = vadd.f32 0.0, %v693
  %v695 = vpop.f32.mrf.mxu0
  %v696 = vadd.f32 0.0, %v695
  %697 = vmatmul.bf16.gmra.mxu0 %v609
  %v698 = vpop.f32.mrf.mxu0
  %v699 = vadd.f32 0.0, %v698
  %v700 = vpop.f32.mrf.mxu0
  %v701 = vadd.f32 0.0, %v700
  %702 = vmatmul.bf16.gmra.mxu0 %v612
  %v703 = vpop.f32.mrf.mxu0
  %v704 = vadd.f32 0.0, %v703
  %v705 = vpop.f32.mrf.mxu0
  %v706 = vadd.f32 0.0, %v705
  %707 = vmatmul.bf16.gmra.mxu0 %v615
  %v708 = vpop.f32.mrf.mxu0
  %v709 = vadd.f32 0.0, %v708
  %v710 = vpop.f32.mrf.mxu0
  %v711 = vadd.f32 0.0, %v710
  %712 = vmatmul.bf16.gmra.mxu0 %v618
  %v713 = vpop.f32.mrf.mxu0
  %v714 = vadd.f32 0.0, %v713
  %v715 = vpop.f32.mrf.mxu0
  %v716 = vadd.f32 0.0, %v715
  %717 = vdwg.mxu0
  %v718 = vadd.f32 %v460, %v630
  %v719 = vadd.f32 %v509, %v679
  %v720 = vadd.f32 %v462, %v632
  %v721 = vadd.f32 %v511, %v681
  %v722 = vadd.f32 %v465, %v635
  %v723 = vadd.f32 %v514, %v684
  %v724 = vadd.f32 %v467, %v637
  %v725 = vadd.f32 %v516, %v686
  %v726 = vadd.f32 %v470, %v640
  %v727 = vadd.f32 %v519, %v689
  %v728 = vadd.f32 %v472, %v642
  %v729 = vadd.f32 %v521, %v691
  %v730 = vadd.f32 %v475, %v645
  %v731 = vadd.f32 %v524, %v694
  %v732 = vadd.f32 %v477, %v647
  %v733 = vadd.f32 %v526, %v696
  %v734 = vadd.f32 %v480, %v650
  %v735 = vadd.f32 %v529, %v699
  %v736 = vadd.f32 %v482, %v652
  %v737 = vadd.f32 %v531, %v701
  %v738 = vadd.f32 %v485, %v655
  %v739 = vadd.f32 %v534, %v704
  %v740 = vadd.f32 %v487, %v657
  %v741 = vadd.f32 %v536, %v706
  %v742 = vadd.f32 %v490, %v660
  %v743 = vadd.f32 %v539, %v709
  %v744 = vadd.f32 %v492, %v662
  %v745 = vadd.f32 %v541, %v711
  %v746 = vadd.f32 %v495, %v665
  %v747 = vadd.f32 %v544, %v714
  %v748 = vadd.f32 %v497, %v667
  %v749 = vadd.f32 %v546, %v716
  %v750 = vld [vmem:[%s8] sm:$0x3]
  %v752 = vperm.slane %v750, 0
  %v753 = vperm.slane %v750, 1
  %v756 = vadd.f32 %v718, %v752
  %v757 = vadd.f32 %v719, %v753
  %v758 = vadd.f32 %v720, %v752
  %v759 = vadd.f32 %v721, %v753
  %v760 = vadd.f32 %v722, %v752
  %v761 = vadd.f32 %v723, %v753
  %v762 = vadd.f32 %v724, %v752
  %v763 = vadd.f32 %v725, %v753
  %v764 = vadd.f32 %v726, %v752
  %v765 = vadd.f32 %v727, %v753
  %v766 = vadd.f32 %v728, %v752
  %v767 = vadd.f32 %v729, %v753
  %v768 = vadd.f32 %v730, %v752
  %v769 = vadd.f32 %v731, %v753
  %v770 = vadd.f32 %v732, %v752
  %v771 = vadd.f32 %v733, %v753
  %v772 = vadd.f32 %v734, %v752
  %v773 = vadd.f32 %v735, %v753
  %v774 = vadd.f32 %v736, %v752
  %v775 = vadd.f32 %v737, %v753
  %v776 = vadd.f32 %v738, %v752
  %v777 = vadd.f32 %v739, %v753
  %v778 = vadd.f32 %v740, %v752
  %v779 = vadd.f32 %v741, %v753
  %v780 = vadd.f32 %v742, %v752
  %v781 = vadd.f32 %v743, %v753
  %v782 = vadd.f32 %v744, %v752
  %v783 = vadd.f32 %v745, %v753
  %v784 = vadd.f32 %v746, %v752
  %v785 = vadd.f32 %v747, %v753
  %v786 = vadd.f32 %v748, %v752
  %v787 = vadd.f32 %v749, %v753
  %v788 = vmax.f32 %v756, 0.0
  %v789 = vmax.f32 %v757, 0.0
  %v790 = vmax.f32 %v758, 0.0
  %v791 = vmax.f32 %v759, 0.0
  %v792 = vmax.f32 %v760, 0.0
  %v793 = vmax.f32 %v761, 0.0
  %v794 = vmax.f32 %v762, 0.0
  %v795 = vmax.f32 %v763, 0.0
  %v796 = vmax.f32 %v764, 0.0
  %v797 = vmax.f32 %v765, 0.0
  %v798 = vmax.f32 %v766, 0.0
  %v799 = vmax.f32 %v767, 0.0
  %v800 = vmax.f32 %v768, 0.0
  %v801 = vmax.f32 %v769, 0.0
  %v802 = vmax.f32 %v770, 0.0
  %v803 = vmax.f32 %v771, 0.0
  %v804 = vmax.f32 %v772, 0.0
  %v805 = vmax.f32 %v773, 0.0
  %v806 = vmax.f32 %v774, 0.0
  %v807 = vmax.f32 %v775, 0.0
  %v808 = vmax.f32 %v776, 0.0
  %v809 = vmax.f32 %v777, 0.0
  %v810 = vmax.f32 %v778, 0.0
  %v811 = vmax.f32 %v779, 0.0
  %v812 = vmax.f32 %v780, 0.0
  %v813 = vmax.f32 %v781, 0.0
  %v814 = vmax.f32 %v782, 0.0
  %v815 = vmax.f32 %v783, 0.0
  %v816 = vmax.f32 %v784, 0.0
  %v817 = vmax.f32 %v785, 0.0
  %v818 = vmax.f32 %v786, 0.0
  %v819 = vmax.f32 %v787, 0.0
  %v820 = vpack.c.bf16 %v790, %v788
  %v821 = vpack.c.bf16 %v791, %v789
  %v822 = vpack.c.bf16 %v794, %v792
  %v823 = vpack.c.bf16 %v795, %v793
  %v824 = vpack.c.bf16 %v798, %v796
  %v825 = vpack.c.bf16 %v799, %v797
  %v826 = vpack.c.bf16 %v802, %v800
  %v827 = vpack.c.bf16 %v803, %v801
  %v828 = vpack.c.bf16 %v806, %v804
  %v829 = vpack.c.bf16 %v807, %v805
  %v830 = vpack.c.bf16 %v810, %v808
  %v831 = vpack.c.bf16 %v811, %v809
  %v832 = vpack.c.bf16 %v814, %v812
  %v833 = vpack.c.bf16 %v815, %v813
  %v834 = vpack.c.bf16 %v818, %v816
  %v835 = vpack.c.bf16 %v819, %v817
  %v836 = vld [vmem:[%s9] sm:$0xf]
  %v837 = vld [vmem:[%s9 + $0x4] sm:$0xf]
  %v838 = vld [vmem:[%s9 + $0x8] sm:$0xf]
  %v839 = vld [vmem:[%s9 + $0xc] sm:$0xf]
  %v840 = vld [vmem:[%s9 + $0x10] sm:$0xf]
  %v841 = vld [vmem:[%s9 + $0x14] sm:$0xf]
  %v842 = vld [vmem:[%s9 + $0x18] sm:$0xf]
  %v843 = vld [vmem:[%s9 + $0x1c] sm:$0xf]
  %v844 = vld [vmem:[%s9 + $0x20] sm:$0xf]
  %v845 = vld [vmem:[%s9 + $0x24] sm:$0xf]
  %v846 = vld [vmem:[%s9 + $0x28] sm:$0xf]
  %v847 = vld [vmem:[%s9 + $0x2c] sm:$0xf]
  %v848 = vld [vmem:[%s9 + $0x30] sm:$0xf]
  %v849 = vld [vmem:[%s9 + $0x34] sm:$0xf]
  %v850 = vld [vmem:[%s9 + $0x38] sm:$0xf]
  %v851 = vld [vmem:[%s9 + $0x3c] sm:$0xf]
  %v852 = vld [vmem:[%s9 + $0x40] sm:$0xf]
  %v853 = vld [vmem:[%s9 + $0x44] sm:$0xf]
  %v854 = vld [vmem:[%s9 + $0x48] sm:$0xf]
  %v855 = vld [vmem:[%s9 + $0x4c] sm:$0xf]
  %v856 = vld [vmem:[%s9 + $0x50] sm:$0xf]
  %v857 = vld [vmem:[%s9 + $0x54] sm:$0xf]
  %v858 = vld [vmem:[%s9 + $0x58] sm:$0xf]
  %v859 = vld [vmem:[%s9 + $0x5c] sm:$0xf]
  %v860 = vld [vmem:[%s9 + $0x60] sm:$0xf]
  %v861 = vld [vmem:[%s9 + $0x64] sm:$0xf]
  %v862 = vld [vmem:[%s9 + $0x68] sm:$0xf]
  %v863 = vld [vmem:[%s9 + $0x6c] sm:$0xf]
  %v864 = vld [vmem:[%s9 + $0x70] sm:$0xf]
  %v865 = vld [vmem:[%s9 + $0x74] sm:$0xf]
  %v866 = vld [vmem:[%s9 + $0x78] sm:$0xf]
  %v867 = vld [vmem:[%s9 + $0x7c] sm:$0xf]
  %v868 = vld [vmem:[%s10] sm:$0x1]
  %v870 = vperm.slane %v868, 0
  %v904 = vunpack.c.l.b16 %v836
  %v905 = vunpack.c.l.b16 %v837
  %v906 = vunpack.c.l.b16 %v838
  %v907 = vunpack.c.l.b16 %v839
  %v908 = vunpack.c.l.b16 %v840
  %v909 = vunpack.c.l.b16 %v841
  %v910 = vunpack.c.l.b16 %v842
  %v911 = vunpack.c.l.b16 %v843
  %v912 = vunpack.c.l.b16 %v844
  %v913 = vunpack.c.l.b16 %v845
  %v914 = vunpack.c.l.b16 %v846
  %v915 = vunpack.c.l.b16 %v847
  %v916 = vunpack.c.l.b16 %v848
  %v917 = vunpack.c.l.b16 %v849
  %v918 = vunpack.c.l.b16 %v850
  %v919 = vunpack.c.l.b16 %v851
  %v920 = vunpack.c.l.b16 %v852
  %v921 = vunpack.c.l.b16 %v853
  %v922 = vunpack.c.l.b16 %v854
  %v923 = vunpack.c.l.b16 %v855
  %v924 = vunpack.c.l.b16 %v856
  %v925 = vunpack.c.l.b16 %v857
  %v926 = vunpack.c.l.b16 %v858
  %v927 = vunpack.c.l.b16 %v859
  %v928 = vunpack.c.l.b16 %v860
  %v929 = vunpack.c.l.b16 %v861
  %v930 = vunpack.c.l.b16 %v862
  %v931 = vunpack.c.l.b16 %v863
  %v932 = vunpack.c.l.b16 %v864
  %v933 = vunpack.c.l.b16 %v865
  %v934 = vunpack.c.l.b16 %v866
  %v935 = vunpack.c.l.b16 %v867
  %v936 = vpack.c.b16 %v905, %v904
  %v937 = vpack.c.b16 %v907, %v906
  %v938 = vpack.c.b16 %v909, %v908
  %v939 = vpack.c.b16 %v911, %v910
  %v940 = vpack.c.b16 %v913, %v912
  %v941 = vpack.c.b16 %v915, %v914
  %v942 = vpack.c.b16 %v917, %v916
  %v943 = vpack.c.b16 %v919, %v918
  %v944 = vpack.c.b16 %v921, %v920
  %v945 = vpack.c.b16 %v923, %v922
  %v946 = vpack.c.b16 %v925, %v924
  %v947 = vpack.c.b16 %v927, %v926
  %v948 = vpack.c.b16 %v929, %v928
  %v949 = vpack.c.b16 %v931, %v930
  %v950 = vpack.c.b16 %v933, %v932
  %v951 = vpack.c.b16 %v935, %v934
  %968 = vmatpush.bf16.msra.mxu0 %v943
  %969 = vmatpush.bf16.msra.mxu0 %v942
  %970 = vmatpush.bf16.msra.mxu0 %v941
  %971 = vmatpush.bf16.msra.mxu0 %v940
  %972 = vmatpush.bf16.msra.mxu0 %v939
  %973 = vmatpush.bf16.msra.mxu0 %v938
  %974 = vmatpush.bf16.msra.mxu0 %v937
  %975 = vmatpush.bf16.msra.mxu0 %v936
  %976 = vmatmul.bf16.gmra.mxu0 %v820
  %v977 = vpop.f32.mrf.mxu0
  %v978 = vadd.f32 %v870, %v977
  %v979 = vpop.f32.mrf.mxu0
  %v980 = vadd.f32 %v870, %v979
  %981 = vmatmul.bf16.gmra.mxu0 %v822
  %v982 = vpop.f32.mrf.mxu0
  %v983 = vadd.f32 %v870, %v982
  %v984 = vpop.f32.mrf.mxu0
  %v985 = vadd.f32 %v870, %v984
  %986 = vmatmul.bf16.gmra.mxu0 %v824
  %v987 = vpop.f32.mrf.mxu0
  %v988 = vadd.f32 %v870, %v987
  %v989 = vpop.f32.mrf.mxu0
  %v990 = vadd.f32 %v870, %v989
  %991 = vmatmul.bf16.gmra.mxu0 %v826
  %v992 = vpop.f32.mrf.mxu0
  %v993 = vadd.f32 %v870, %v992
  %v994 = vpop.f32.mrf.mxu0
  %v995 = vadd.f32 %v870, %v994
  %996 = vmatmul.bf16.gmra.mxu0 %v828
  %v997 = vpop.f32.mrf.mxu0
  %v998 = vadd.f32 %v870, %v997
  %v999 = vpop.f32.mrf.mxu0
  %v1000 = vadd.f32 %v870, %v999
  %1001 = vmatmul.bf16.gmra.mxu0 %v830
  %v1002 = vpop.f32.mrf.mxu0
  %v1003 = vadd.f32 %v870, %v1002
  %v1004 = vpop.f32.mrf.mxu0
  %v1005 = vadd.f32 %v870, %v1004
  %1006 = vmatmul.bf16.gmra.mxu0 %v832
  %v1007 = vpop.f32.mrf.mxu0
  %v1008 = vadd.f32 %v870, %v1007
  %v1009 = vpop.f32.mrf.mxu0
  %v1010 = vadd.f32 %v870, %v1009
  %1011 = vmatmul.bf16.gmra.mxu0 %v834
  %v1012 = vpop.f32.mrf.mxu0
  %v1013 = vadd.f32 %v870, %v1012
  %v1014 = vpop.f32.mrf.mxu0
  %v1015 = vadd.f32 %v870, %v1014
  %1016 = vdwg.mxu0
  %1017 = vmatpush.bf16.msra.mxu0 %v951
  %1018 = vmatpush.bf16.msra.mxu0 %v950
  %1019 = vmatpush.bf16.msra.mxu0 %v949
  %1020 = vmatpush.bf16.msra.mxu0 %v948
  %1021 = vmatpush.bf16.msra.mxu0 %v947
  %1022 = vmatpush.bf16.msra.mxu0 %v946
  %1023 = vmatpush.bf16.msra.mxu0 %v945
  %1024 = vmatpush.bf16.msra.mxu0 %v944
  %1025 = vmatmul.bf16.gmra.mxu0 %v821
  %v1026 = vpop.f32.mrf.mxu0
  %v1027 = vadd.f32 %v978, %v1026
  %v1028 = vpop.f32.mrf.mxu0
  %v1029 = vadd.f32 %v980, %v1028
  %1030 = vmatmul.bf16.gmra.mxu0 %v823
  %v1031 = vpop.f32.mrf.mxu0
  %v1032 = vadd.f32 %v983, %v1031
  %v1033 = vpop.f32.mrf.mxu0
  %v1034 = vadd.f32 %v985, %v1033
  %1035 = vmatmul.bf16.gmra.mxu0 %v825
  %v1036 = vpop.f32.mrf.mxu0
  %v1037 = vadd.f32 %v988, %v1036
  %v1038 = vpop.f32.mrf.mxu0
  %v1039 = vadd.f32 %v990, %v1038
  %1040 = vmatmul.bf16.gmra.mxu0 %v827
  %v1041 = vpop.f32.mrf.mxu0
  %v1042 = vadd.f32 %v993, %v1041
  %v1043 = vpop.f32.mrf.mxu0
  %v1044 = vadd.f32 %v995, %v1043
  %1045 = vmatmul.bf16.gmra.mxu0 %v829
  %v1046 = vpop.f32.mrf.mxu0
  %v1047 = vadd.f32 %v998, %v1046
  %v1048 = vpop.f32.mrf.mxu0
  %v1049 = vadd.f32 %v1000, %v1048
  %1050 = vmatmul.bf16.gmra.mxu0 %v831
  %v1051 = vpop.f32.mrf.mxu0
  %v1052 = vadd.f32 %v1003, %v1051
  %v1053 = vpop.f32.mrf.mxu0
  %v1054 = vadd.f32 %v1005, %v1053
  %1055 = vmatmul.bf16.gmra.mxu0 %v833
  %v1056 = vpop.f32.mrf.mxu0
  %v1057 = vadd.f32 %v1008, %v1056
  %v1058 = vpop.f32.mrf.mxu0
  %v1059 = vadd.f32 %v1010, %v1058
  %1060 = vmatmul.bf16.gmra.mxu0 %v835
  %v1061 = vpop.f32.mrf.mxu0
  %v1062 = vadd.f32 %v1013, %v1061
  %v1063 = vpop.f32.mrf.mxu0
  %v1064 = vadd.f32 %v1015, %v1063
  %1065 = vdwg.mxu0
  %v1066 = vmax.f32 %v1027, 0.0
  %v1067 = vmax.f32 %v1029, 0.0
  %v1068 = vmax.f32 %v1032, 0.0
  %v1069 = vmax.f32 %v1034, 0.0
  %v1070 = vmax.f32 %v1037, 0.0
  %v1071 = vmax.f32 %v1039, 0.0
  %v1072 = vmax.f32 %v1042, 0.0
  %v1073 = vmax.f32 %v1044, 0.0
  %v1074 = vmax.f32 %v1047, 0.0
  %v1075 = vmax.f32 %v1049, 0.0
  %v1076 = vmax.f32 %v1052, 0.0
  %v1077 = vmax.f32 %v1054, 0.0
  %v1078 = vmax.f32 %v1057, 0.0
  %v1079 = vmax.f32 %v1059, 0.0
  %v1080 = vmax.f32 %v1062, 0.0
  %v1081 = vmax.f32 %v1064, 0.0
  %1082 = vxpose.xlu0.b32.start [1/16] %v1066, 128
  %1083 = vxpose.xlu0.b32.cont [2/16] %v1067, 128
  %1084 = vxpose.xlu0.b32.cont [3/16] %v1068, 128
  %1085 = vxpose.xlu0.b32.cont [4/16] %v1069, 128
  %1086 = vxpose.xlu0.b32.cont [5/16] %v1070, 128
  %1087 = vxpose.xlu0.b32.cont [6/16] %v1071, 128
  %1088 = vxpose.xlu0.b32.cont [7/16] %v1072, 128
  %1089 = vxpose.xlu0.b32.cont [8/16] %v1073, 128
  %1090 = vxpose.xlu0.b32.cont [9/16] %v1074, 128
  %1091 = vxpose.xlu0.b32.cont [10/16] %v1075, 128
  %1092 = vxpose.xlu0.b32.cont [11/16] %v1076, 128
  %1093 = vxpose.xlu0.b32.cont [12/16] %v1077, 128
  %1094 = vxpose.xlu0.b32.cont [13/16] %v1078, 128
  %1095 = vxpose.xlu0.b32.cont [14/16] %v1079, 128
  %1096 = vxpose.xlu0.b32.cont [15/16] %v1080, 128
  %1097 = vxpose.xlu0.b32.end [16/16] %v1081, 128
  %v1098 = vpop.trf.xlu0
  %v1099 = vpop.trf.xlu0
  %v1100 = vpop.trf.xlu0
  %v1101 = vpop.trf.xlu0
  %v1102 = vpop.trf.xlu0
  %v1103 = vpop.trf.xlu0
  %v1104 = vpop.trf.xlu0
  %v1105 = vpop.trf.xlu0
  %v1106 = vpop.trf.xlu0
  %v1107 = vpop.trf.xlu0
  %v1108 = vpop.trf.xlu0
  %v1109 = vpop.trf.xlu0
  %v1110 = vpop.trf.xlu0
  %v1111 = vpop.trf.xlu0
  %v1112 = vpop.trf.xlu0
  %v1113 = vpop.trf.xlu0
  %v1114 = vpack.c.bf16 %v1099, %v1098
  %v1115 = vpack.c.bf16 %v1101, %v1100
  %v1116 = vpack.c.bf16 %v1103, %v1102
  %v1117 = vpack.c.bf16 %v1105, %v1104
  %v1118 = vpack.c.bf16 %v1107, %v1106
  %v1119 = vpack.c.bf16 %v1109, %v1108
  %v1120 = vpack.c.bf16 %v1111, %v1110
  %v1121 = vpack.c.bf16 %v1113, %v1112
  %v1122 = vld [vmem:[%s11] sm:$0xf]
  %v1123 = vld [vmem:[%s12] sm:$0xff]
  %1125 = vset.pattern.permute.xlu0 0
  %1126 = vperm.xlu0 %1125, %v1123
  %v1127 = vpop.permute.xlu0 %1126
  %1129 = vmatpush.bf16.msra.mxu0 %v1121
  %1130 = vmatpush.bf16.msra.mxu0 %v1120
  %1131 = vmatpush.bf16.msra.mxu0 %v1119
  %1132 = vmatpush.bf16.msra.mxu0 %v1118
  %1133 = vmatpush.bf16.msra.mxu0 %v1117
  %1134 = vmatpush.bf16.msra.mxu0 %v1116
  %1135 = vmatpush.bf16.msra.mxu0 %v1115
  %1136 = vmatpush.bf16.msra.mxu0 %v1114
  %1137 = vmatmul.bf16.gmra.mxu0 %v1122
  %v1138 = vpop.f32.mrf.mxu0
  %v1139 = vadd.f32 %v1127, %v1138
  %v1140 = vpop.f32.mrf.mxu0
  %1141 = vdwg.mxu0
  %v1142 = vxor.u32 %v1139, 2147483648
  %v1143 = vmul.f32 %v1142, 1.442695
  %v1144 = vpow.pop %v1143
  %v1145 = vadd.f32 %v1144, 1.0
  %v1146 = vrcp.pop %v1145
  %v1147 = vmul.f32 %v1145, %v1146
  %v1148 = vsub.f32 1.0, %v1147
  %v1149 = vmul.f32 %v1146, %v1148
  %v1150 = vadd.f32 %v1146, %v1149
  %vm1151 = vweird.f32 %v1145
  %vm1152 = vweird.f32 %v1146
  %vm1153 = vmor %vm1151, %vm1152
  %v1154 = vsel %vm1153, %v1146, %v1150
  %v1155 = vand.u32 2147483647, %v1145
  %vm1156 = vcmp.eq.f32.partialorder %v1155, 8.507059e+37
  %v1157 = vand.u32 %v1145, 2147483648
  %v1158 = vor.u32 1.1754944e-38, %v1157
  %v1159 = vsel %vm1156, %v1158, %v1154
  %v1160 = vmul.f32 1.0, %v1159
  %v1161 = vmul.f32 %v1160, 255.0
  %1162 = vst [vmem:[%s13] sm:$0xff] %v1161
  // Predicated region
  $region54: #{rgb_prediction_forward.1} parent=0 // pred_check
    _
  $region55: #{rgb_prediction_forward.1} parent=0 // pred_check_branch
    %1164 = sbr.rel (0) target = $region57
  $region56: #{rgb_prediction_forward.1} parent=0 // pred_region
    _
  $region57: #{rgb_prediction_forward.1} parent=0 // pred_fallthru
    _
  // Predicated region
  $region58: #{rgb_prediction_forward.1} parent=0 // pred_check
    _
  $region59: #{rgb_prediction_forward.1} parent=0 // pred_check_branch
    %1166 = sbr.rel (0) target = $region61
  $region60: #{rgb_prediction_forward.1} parent=0 // pred_region
    _
  $region61: #{rgb_prediction_forward.1} parent=0 // pred_fallthru
    _

</llo_original>
